<compile_context>
chip_gen: v7x
topology: tpu7x:2x2x1
jax: 0.10.0
libtpu: 0.0.40
codegen_flags: <defaults>
</compile_context>

<pallas_src>
import functools

import jax
import jax.numpy as jnp
from jax import lax
from jax.experimental import pallas as pl
from jax.experimental.pallas import tpu as pltpu


def _attn_weights_kernel(q_ref, k_ref, o_ref, *, q_tile):
    # q_ref: (G, Tq, hd)   (Q already pre-scaled by 1/sqrt(hd))
    # k_ref: (G, T,  hd)
    # o_ref: (G, Tq, T)
    q = q_ref[...]
    k = k_ref[...]

    # scores = Q K^T  (MXU batched matmul, f32 accumulate, no explicit k.T)
    s = jnp.einsum("gqd,gkd->gqk", q, k,
                   preferred_element_type=jnp.float32)      # (G, Tq, T)

    tq, t = s.shape[1], s.shape[2]
    # causal mask: global query position attends to key positions <= it
    row = lax.broadcasted_iota(jnp.int32, (tq, t), 0) + pl.program_id(1) * q_tile
    col = lax.broadcasted_iota(jnp.int32, (tq, t), 1)
    s = jnp.where((col <= row)[None, :, :], s, -1e30)

    # numerically-stable softmax over the last axis
    m = jnp.max(s, axis=-1, keepdims=True)
    p = jnp.exp(s - m)
    denom = jnp.sum(p, axis=-1, keepdims=True)
    o_ref[...] = (p * pl.reciprocal(denom, approx=False)).astype(o_ref.dtype)


def attention_weights_pallas(q, k, *, heads_per_block=8, q_tile=256):
    """q, k: [BH, T, hd] float32 (q pre-scaled) -> attention weights [BH, T, T]."""
    BH, T, hd = q.shape

    # heads per grid step (must divide BH); keep >=2 grid steps when possible
    # so v7x's second TensorCore gets work.
    g = min(heads_per_block, BH)
    while BH % g:
        g -= 1
    if BH // g == 1 and g % 2 == 0:
        g //= 2

    # query tile (must divide T); keeps per-block VMEM bounded at large T.
    tq = min(q_tile, T)
    while T % tq:
        tq -= 1

    kernel = functools.partial(_attn_weights_kernel, q_tile=tq)
    return pl.pallas_call(
        kernel,
        out_shape=jax.ShapeDtypeStruct((BH, T, T), jnp.float32),
        grid_spec=pltpu.PrefetchScalarGridSpec(
            num_scalar_prefetch=0,
            grid=(BH // g, T // tq),
            in_specs=[
                pl.BlockSpec((g, tq, hd), lambda i, j: (i, j, 0)),
                pl.BlockSpec((g, T, hd), lambda i, j: (i, 0, 0)),
            ],
            out_specs=pl.BlockSpec((g, tq, T), lambda i, j: (i, j, 0)),
        ),
        compiler_params=pltpu.CompilerParams(
            dimension_semantics=("parallel", "parallel")),
    )(q, k)


class AttentionViz:
    """JAX analogue of viz.py::Attention.

    Holds deterministic projection weights for a single GPT-style causal
    self-attention block ("option_dt") and, on forward(x), returns the
    attention weights that the PyTorch forward hook would have captured.
    """

    def __init__(self, embed_dim: int, n_heads: int, key):
        assert embed_dim % n_heads == 0
        self.D = embed_dim
        self.H = n_heads
        self.hd = embed_dim // n_heads
        kq, kk = jax.random.split(key)
        std = 0.02
        self.w_q = std * jax.random.normal(kq, (embed_dim, embed_dim), jnp.float32)
        self.w_k = std * jax.random.normal(kk, (embed_dim, embed_dim), jnp.float32)
        # TODO(synk): the real option_dt also has V/out projections, MLP and
        # residual stack; they do not affect the returned attention map, so
        # only the Q/K path feeding the attention weights is materialized.

    def forward(self, x):
        # x: [B, T, D]
        B, T, D = x.shape
        assert D == self.D
        scale = float(self.hd) ** -0.5          # Python float, not a traced scalar
        # glue: Q/K projections, split heads; scale folded into Q (T*hd elems,
        # not T*T scores).
        q = ((x @ self.w_q) * scale).reshape(B, T, self.H, self.hd).transpose(0, 2, 1, 3)
        k = (x @ self.w_k).reshape(B, T, self.H, self.hd).transpose(0, 2, 1, 3)
        # TODO(synk): at large shapes the head transpose round-trip could be
        # avoided by indexing heads inside the kernel via BlockSpec; kept in
        # plain JAX here because hd is not a multiple of 128.
        q = q.reshape(B * self.H, T, self.hd)
        k = k.reshape(B * self.H, T, self.hd)
        att = attention_weights_pallas(q, k)     # [B*H, T, T]
        return att.reshape(B, self.H, T, T)


def _reference(x, w_q, w_k, n_heads):
    B, T, D = x.shape
    hd = D // n_heads
    q = (x @ w_q).reshape(B, T, n_heads, hd).transpose(0, 2, 1, 3)
    k = (x @ w_k).reshape(B, T, n_heads, hd).transpose(0, 2, 1, 3)
    s = jnp.einsum("bhqd,bhkd->bhqk", q, k) / jnp.sqrt(jnp.float32(hd))
    mask = jnp.tril(jnp.ones((T, T), bool))
    s = jnp.where(mask, s, jnp.finfo(jnp.float32).min)
    return jax.nn.softmax(s, axis=-1)


if __name__ == "__main__":
    key = jax.random.PRNGKey(0)
    k_param, k_x = jax.random.split(key)

    B, T, D, H = 2, 8, 32, 2
    module = AttentionViz(embed_dim=D, n_heads=H, key=k_param)
    x = jax.random.normal(k_x, (B, T, D), jnp.float32)

    att = module.forward(x)
    att = jax.block_until_ready(att)

    ref = _reference(x, module.w_q, module.w_k, H)
    assert att.shape == (B, H, T, T)
    assert jnp.allclose(att, ref, atol=1e-5, rtol=1e-5)
    # rows sum to 1
    assert jnp.allclose(att.sum(-1), jnp.ones((B, H, T)), atol=1e-5)

    print("KERNEL_OK")
</pallas_src>

<mosaic_0001>
module attributes {stable_mosaic.version = 11 : i64} {
  func.func @_attn_weights_kernel(%arg0: i32, %arg1: i32, %arg2: memref<2x8x16xf32, #tpu.memory_space<vmem>>, %arg3: memref<2x8x16xf32, #tpu.memory_space<vmem>>, %arg4: memref<2x8x8xf32, #tpu.memory_space<vmem>>) attributes {dimension_semantics = [#tpu.dimension_semantics<parallel>, #tpu.dimension_semantics<parallel>], iteration_bounds = array<i64: 2, 1>, scalar_prefetch = 0 : i64, scratch_operands = 0 : i64, tpu.core_type = #tpu.core_type<tc>, window_params = [{transform_indices = @transform_0, window_bounds = array<i64: 2, 8, 16>}, {transform_indices = @transform_1, window_bounds = array<i64: 2, 8, 16>}, {transform_indices = @transform_2, window_bounds = array<i64: 2, 8, 8>}]} {
    %c0 = arith.constant 0 : index
    %c0_0 = arith.constant 0 : index
    %c0_1 = arith.constant 0 : index
    %0 = vector.load %arg2[%c0, %c0_0, %c0_1] : memref<2x8x16xf32, #tpu.memory_space<vmem>>, vector<2x8x16xf32>
    %c0_2 = arith.constant 0 : index
    %c0_3 = arith.constant 0 : index
    %c0_4 = arith.constant 0 : index
    %1 = vector.load %arg3[%c0_2, %c0_3, %c0_4] : memref<2x8x16xf32, #tpu.memory_space<vmem>>, vector<2x8x16xf32>
    "tpu.trace_start"() <{level = 10 : i32, message = "gqd,gkd->gqk"}> : () -> ()
    %cst = arith.constant dense<0.000000e+00> : vector<2x8x8xf32>
    %2 = tpu.matmul %0, %1, %cst {dimension_numbers = #tpu.dot_dimension_numbers<[2], [2], [1], [1], [0, 0, 0, 1, 1, 1], [0], [0]>} : vector<2x8x16xf32>, vector<2x8x16xf32>, vector<2x8x8xf32> -> vector<2x8x8xf32>
    "tpu.trace_stop"() : () -> ()
    %3 = tpu.iota {dimensions = array<i32: 0>} : vector<8x8xi32>
    %c8_i32 = arith.constant 8 : i32
    %4 = arith.muli %arg1, %c8_i32 : i32
    %5 = vector.broadcast %4 : i32 to vector<8x8xi32>
    %6 = arith.addi %3, %5 : vector<8x8xi32>
    %7 = tpu.iota {dimensions = array<i32: 1>} : vector<8x8xi32>
    %8 = arith.cmpi sle, %7, %6 : vector<8x8xi32>
    %9 = vector.shape_cast %8 : vector<8x8xi1> to vector<1x8x8xi1>
    %cst_5 = arith.constant -1.000000e+30 : f32
    %10 = vector.shape_cast %9 : vector<1x8x8xi1> to vector<1x8x8xi1>
    %11 = vector.broadcast %10 : vector<1x8x8xi1> to vector<2x8x8xi1>
    %12 = vector.broadcast %cst_5 : f32 to vector<2x8x8xf32>
    %13 = arith.select %11, %2, %12 : vector<2x8x8xi1>, vector<2x8x8xf32>
    %cst_6 = arith.constant dense<0xFF800000> : vector<2x8xf32>
    %14 = vector.multi_reduction <maximumf>, %13, %cst_6 [2] : vector<2x8x8xf32> to vector<2x8xf32>
    %15 = vector.shape_cast %14 : vector<2x8xf32> to vector<2x8x1xf32>
    %16 = vector.broadcast %15 : vector<2x8x1xf32> to vector<2x8x8xf32>
    %17 = arith.subf %13, %16 : vector<2x8x8xf32>
    %18 = math.exp %17 : vector<2x8x8xf32>
    %cst_7 = arith.constant dense<0.000000e+00> : vector<2x8xf32>
    %19 = vector.multi_reduction <add>, %18, %cst_7 [2] : vector<2x8x8xf32> to vector<2x8xf32>
    %20 = vector.shape_cast %19 : vector<2x8xf32> to vector<2x8x1xf32>
    %21 = tpu.reciprocal %20 : vector<2x8x1xf32> -> vector<2x8x1xf32>
    %22 = vector.broadcast %21 : vector<2x8x1xf32> to vector<2x8x8xf32>
    %23 = arith.mulf %18, %22 : vector<2x8x8xf32>
    %c0_8 = arith.constant 0 : index
    %c0_9 = arith.constant 0 : index
    %c0_10 = arith.constant 0 : index
    %24 = vector.load %arg4[%c0_8, %c0_9, %c0_10] : memref<2x8x8xf32, #tpu.memory_space<vmem>>, vector<2x8x8xf32>
    tpu.vector_store %arg4[%c0_8, %c0_9, %c0_10], %23 {strides = array<i32>} : memref<2x8x8xf32, #tpu.memory_space<vmem>>, vector<2x8x8xf32>,
    return
  }
  func.func @transform_0(%arg0: i32, %arg1: i32) -> (i32, i32, i32) {
    %c0_i32 = arith.constant 0 : i32
    %c0_i32_0 = arith.constant 0 : i32
    return %arg0, %arg1, %c0_i32 : i32, i32, i32
  }
  func.func @transform_1(%arg0: i32, %arg1: i32) -> (i32, i32, i32) {
    %c0_i32 = arith.constant 0 : i32
    %c0_i32_0 = arith.constant 0 : i32
    %c0_i32_1 = arith.constant 0 : i32
    return %arg0, %c0_i32, %c0_i32_0 : i32, i32, i32
  }
  func.func @transform_2(%arg0: i32, %arg1: i32) -> (i32, i32, i32) {
    %c0_i32 = arith.constant 0 : i32
    %c0_i32_0 = arith.constant 0 : i32
    return %arg0, %arg1, %c0_i32 : i32, i32, i32
  }
}

</mosaic_0001>

<llo_original>
// kernel: tpu_custom_call.1
$region0: #{tpu_custom_call.1}
  #allocation0 [shape = 'u32[]', space=smem, size = 0x4, offset = 0x4, fixed_abs, tag = 'smem constant byte address 0x4 - core index']
  #allocation1 [shape = 'u32[144,128]{1,0:T(1,128)}', space=vmem, size = 0x12000, scoped, tag = 'internal scratch']
  %s0 = inlined_call_operand.hbm [shape: f32[4,8,16], index: 0, kind: input, shape index: {}]
  %s1 = inlined_call_operand.hbm [shape: f32[4,8,16], index: 1, kind: input, shape index: {}]
  %s2 = inlined_call_operand.hbm [shape: f32[4,8,8], index: 2, kind: output, shape index: {}]
  %s3 = sld [smem:[#allocation0]]
  $region49: #{tpu_custom_call.1} parent=0
    _
  %s5 = ssub.s32 1, %s3
  %s6 = scalar_select 0, %s5, %s3
  $region1: #{tpu_custom_call.1} parent=0
    #allocation2 [shape = 'u8[16384]{0}', space=vmem, size = 0x4000, scoped, tag = 'input window, operand 0']
    #allocation3 [shape = 's32[2]{0}', space=sflag, size = 0x8, scoped, tag = 'scoped memory for tpu_custom_call.1']
    #allocation4 [shape = 's32[2]{0}', space=sflag, size = 0x8, scoped, tag = 'scoped memory for tpu_custom_call.1']
    #allocation5 [shape = 'u8[16384]{0}', space=vmem, size = 0x4000, scoped, tag = 'input window, operand 1']
    #allocation6 [shape = 's32[2]{0}', space=sflag, size = 0x8, scoped, tag = 'scoped memory for tpu_custom_call.1']
    #allocation7 [shape = 'u8[16384]{0}', space=vmem, size = 0x4000, scoped, tag = 'output window, operand 0']
    %7 = vsyncpa [#allocation3], 0
    %s8 = scalar_lea.sflag [#allocation3], 1
    %9 = vsyncpa %s8, 0
    %10 = vsyncpa [#allocation6], 0
    %s11 = scalar_lea.sflag [#allocation6], 1
    %12 = vsyncpa %s11, 0
    %13 = vsyncpa [#allocation4], 0
    %s14 = scalar_lea.sflag [#allocation4], 1
    %15 = vsyncpa %s14, 0
    loop: start=0, step=1, limit=4
    $region2: #{tpu_custom_call.1} parent=1 // loop_pre_header
      _
    $region3: #{tpu_custom_call.1} parent=1 // loop_header
      %s17 = sphi 0, %s21
      %p18 = scmp.ge.s32.totalorder %s17, 4
      %s24 = sphi 0, %s36
      %s25 = sphi 0, %s32
      %s26 = sphi 0, %s24
      %s27 = sphi 0, %s25
      %s28 = sphi 0, %s26
      %s29 = sphi 0, %s27
      %s41 = sphi 0, %s43
      %s44 = sphi 0, %s41
      %s45 = sphi 0, %s44
      %s61 = sphi 0, %s45
      %s67 = sphi 0, %s69
      %s70 = sphi 0, %s67
      %s71 = sphi 0, %s70
      %s87 = sphi 0, %s71
      %s95 = sphi 0, %s97
      %s98 = sphi 0, %s95
      %s99 = sphi 0, %s98
      %s115 = sphi 0, %s99
    $region4: #{tpu_custom_call.1} parent=1 // loop_header_branch
      %20 = sbr.rel (%p18) target = $region8
    $region5: #{tpu_custom_call.1} parent=1 // loop_body
      %s22 = ssub.s32 %s17, 1
      %s23 = ssub.s32 %s17, 2
      %s30 = sadd.s32 1, %s25
      %p31 = scmp.ge.s32.totalorder %s30, 1
      %s32 = scalar_select %p31, 0, %s30
      %s33 = sadd.s32 1, %s24
      %s34 = scalar_select %p31, %s33, %s24
      %p35 = scmp.ge.s32.totalorder %s34, 2
      %s36 = scalar_select %p35, 0, %s34
      %s37 = ssub.s32 %s24, %s36
      %s38 = ssub.s32 %s25, %s32
      %s39 = sor.u32 %s37, %s38
      %p40 = scmp.eq.s32.totalorder %s39, 0
      %s42 = sadd.s32 %s41, 1
      %s43 = scalar_select %p40, %s41, %s42
      %p46 = pneg %p40
      %p47 = scmp.eq.s32.totalorder %s17, 1
      %p48 = por %p46, %p47
      %p49 = scmp.ne.s32.totalorder %s41, %s44
      %p50 = scmp.eq.s32.totalorder %s17, 0
      %p51 = por %p49, %p50
      %p52 = scmp.ne.s32.totalorder %s41, %s44
      %p53 = scmp.eq.s32.totalorder %s22, 1
      %p54 = por %p52, %p53
      %p55 = scmp.ne.s32.totalorder %s44, %s45
      %p56 = scmp.eq.s32.totalorder %s22, 0
      %p57 = por %p55, %p56
      %p58 = scmp.ne.s32.totalorder %s44, %s45
      %p59 = scmp.eq.s32.totalorder %s23, 1
      %p60 = por %p58, %p59
      %p62 = scmp.ne.s32.totalorder %s45, %s61
      %p63 = scmp.eq.s32.totalorder %s23, 0
      %p64 = por %p62, %p63
      %s65 = ssub.s32 %s24, %s36
      %p66 = scmp.eq.s32.totalorder %s65, 0
      %s68 = sadd.s32 %s67, 1
      %s69 = scalar_select %p66, %s67, %s68
      %p72 = pneg %p66
      %p73 = scmp.eq.s32.totalorder %s17, 1
      %p74 = por %p72, %p73
      %p75 = scmp.ne.s32.totalorder %s67, %s70
      %p76 = scmp.eq.s32.totalorder %s17, 0
      %p77 = por %p75, %p76
      %p78 = scmp.ne.s32.totalorder %s67, %s70
      %p79 = scmp.eq.s32.totalorder %s22, 1
      %p80 = por %p78, %p79
      %p81 = scmp.ne.s32.totalorder %s70, %s71
      %p82 = scmp.eq.s32.totalorder %s22, 0
      %p83 = por %p81, %p82
      %p84 = scmp.ne.s32.totalorder %s70, %s71
      %p85 = scmp.eq.s32.totalorder %s23, 1
      %p86 = por %p84, %p85
      %p88 = scmp.ne.s32.totalorder %s71, %s87
      %p89 = scmp.eq.s32.totalorder %s23, 0
      %p90 = por %p88, %p89
      %s91 = ssub.s32 %s24, %s36
      %s92 = ssub.s32 %s25, %s32
      %s93 = sor.u32 %s91, %s92
      %p94 = scmp.eq.s32.totalorder %s93, 0
      %s96 = sadd.s32 %s95, 1
      %s97 = scalar_select %p94, %s95, %s96
      %p100 = pneg %p94
      %p101 = scmp.eq.s32.totalorder %s17, 1
      %p102 = por %p100, %p101
      %p103 = scmp.ne.s32.totalorder %s95, %s98
      %p104 = scmp.eq.s32.totalorder %s17, 0
      %p105 = por %p103, %p104
      %p106 = scmp.ne.s32.totalorder %s95, %s98
      %p107 = scmp.eq.s32.totalorder %s22, 1
      %p108 = por %p106, %p107
      %p109 = scmp.ne.s32.totalorder %s98, %s99
      %p110 = scmp.eq.s32.totalorder %s22, 0
      %p111 = por %p109, %p110
      %p112 = scmp.ne.s32.totalorder %s98, %s99
      %p113 = scmp.eq.s32.totalorder %s23, 1
      %p114 = por %p112, %p113
      %p116 = scmp.ne.s32.totalorder %s99, %s115
      %p117 = scmp.eq.s32.totalorder %s23, 0
      %p118 = por %p116, %p117
      %p119 = scmp.le.s32.totalorder 1, %s17
      %p120 = scmp.lt.s32.totalorder %s17, 3
      %p121 = pnand %p119, %p120
      %p122 = pneg %p121
      // Predicated region
      $region9: #{tpu_custom_call.1} parent=5 // pred_check
        _
      $region10: #{tpu_custom_call.1} parent=5 // pred_check_branch
        %124 = sbr.rel (%p121) target = $region12
      $region11: #{tpu_custom_call.1} parent=5 // pred_region
        %s125 = ssub.s32 %s17, 1
      $region12: #{tpu_custom_call.1} parent=5 // pred_fallthru
        _
      %p126 = scmp.lt.s32.totalorder %s17, 2
      // Predicated region
      $region13: #{tpu_custom_call.1} parent=5 // pred_check
        %p127 = pneg %p126
      $region14: #{tpu_custom_call.1} parent=5 // pred_check_branch
        %129 = sbr.rel (%p127) target = $region16
      $region15: #{tpu_custom_call.1} parent=5 // pred_region
        // Predicated region
        $region17: #{tpu_custom_call.1} parent=15 // pred_check
          %p130 = pneg %p51
        $region18: #{tpu_custom_call.1} parent=15 // pred_check_branch
          %132 = sbr.rel (%p130) target = $region20
        $region19: #{tpu_custom_call.1} parent=15 // pred_region
          %s133 = sand.u32 %s41, 1
          %s134 = scalar_lea.sflag [#allocation3], %s133
          %s135 = sand.u32 %s41, 1
          %s136 = smul.addr %s135, 16
          %s137 = scalar_lea.vmem [#allocation2], %s136
          %s138 = smul.u32 2, %s24
          %s140 = ssub.s32 256, 256
          %141 = vsyncadd %s134, %s140
          %s142 = sadd.s32 %s25, %s138
          %s143 = smul.addr %s142, 128
          %s144 = scalar_lea.hbm %s0, %s143
          %s145 = sshll.u32 %s137, 4
          %s146 = int_to_ptr.vmem [resolvable:$true] %s145
          %151 = dma.hbm_to_vmem [thread:$0]  %s144, 256, %s146, %s134, 128, 128, 8
        $region20: #{tpu_custom_call.1} parent=15 // pred_fallthru
          _
        // Predicated region
        $region21: #{tpu_custom_call.1} parent=15 // pred_check
          %p152 = pneg %p77
        $region22: #{tpu_custom_call.1} parent=15 // pred_check_branch
          %154 = sbr.rel (%p152) target = $region24
        $region23: #{tpu_custom_call.1} parent=15 // pred_region
          %s155 = sand.u32 %s67, 1
          %s156 = scalar_lea.sflag [#allocation6], %s155
          %s157 = sand.u32 %s67, 1
          %s158 = smul.addr %s157, 16
          %s159 = scalar_lea.vmem [#allocation5], %s158
          %s160 = smul.u32 2, %s24
          %s162 = ssub.s32 256, 256
          %163 = vsyncadd %s156, %s162
          %s164 = smul.addr %s160, 128
          %s165 = scalar_lea.hbm %s1, %s164
          %s166 = sshll.u32 %s159, 4
          %s167 = int_to_ptr.vmem [resolvable:$true] %s166
          %172 = dma.hbm_to_vmem [thread:$0]  %s165, 256, %s167, %s156, 128, 128, 8
        $region24: #{tpu_custom_call.1} parent=15 // pred_fallthru
          _
      $region16: #{tpu_custom_call.1} parent=5 // pred_fallthru
        _
      %p173 = scmp.le.s32.totalorder 1, %s17
      %p174 = scmp.lt.s32.totalorder %s17, 3
      %p175 = pnand %p173, %p174
      %p176 = pneg %p175
      // Predicated region
      $region25: #{tpu_custom_call.1} parent=5 // pred_check
        _
      $region26: #{tpu_custom_call.1} parent=5 // pred_check_branch
        %178 = sbr.rel (%p175) target = $region28
      $region27: #{tpu_custom_call.1} parent=5 // pred_region
        %s179 = ssub.s32 %s17, 1
        %s180 = sand.u32 %s44, 1
        %s181 = scalar_lea.sflag [#allocation3], %s180
        %s182 = sand.u32 %s44, 1
        %s183 = smul.addr %s182, 16
        %s184 = scalar_lea.vmem [#allocation2], %s183
        // Predicated region
        $region29: #{tpu_custom_call.1} parent=27 // pred_check
          %p185 = pneg %p57
        $region30: #{tpu_custom_call.1} parent=27 // pred_check_branch
          %187 = sbr.rel (%p185) target = $region32
        $region31: #{tpu_custom_call.1} parent=27 // pred_region
          %188 = dma.done %s181, 256
        $region32: #{tpu_custom_call.1} parent=27 // pred_fallthru
          _
        %s189 = sand.u32 %s70, 1
        %s190 = scalar_lea.sflag [#allocation6], %s189
        %s191 = sand.u32 %s70, 1
        %s192 = smul.addr %s191, 16
        %s193 = scalar_lea.vmem [#allocation5], %s192
        // Predicated region
        $region33: #{tpu_custom_call.1} parent=27 // pred_check
          %p194 = pneg %p83
        $region34: #{tpu_custom_call.1} parent=27 // pred_check_branch
          %196 = sbr.rel (%p194) target = $region36
        $region35: #{tpu_custom_call.1} parent=27 // pred_region
          %197 = dma.done %s190, 256
        $region36: #{tpu_custom_call.1} parent=27 // pred_fallthru
          _
        %s198 = sand.u32 %s44, 1
        %s199 = scalar_lea.sflag [#allocation3], %s198
        %s200 = sand.u32 %s44, 1
        %s201 = smul.addr %s200, 16
        %s202 = scalar_lea.vmem [#allocation2], %s201
        %p203 = pneg %p57
        %p204 = pneg %p54
        %s205 = sand.u32 %s70, 1
        %s206 = scalar_lea.sflag [#allocation6], %s205
        %s207 = sand.u32 %s70, 1
        %s208 = smul.addr %s207, 16
        %s209 = scalar_lea.vmem [#allocation5], %s208
        %p210 = pneg %p83
        %p211 = pneg %p80
        %p212 = pneg %p111
        %p213 = pneg %p108
        %s214 = sand.u32 %s98, 1
        %s215 = scalar_lea.sflag [#allocation4], %s214
        %s216 = sand.u32 %s98, 1
        %s217 = smul.addr %s216, 16
        %s218 = scalar_lea.vmem [#allocation7], %s217
        %s219 = smul.u32 2, %s26
        %s220 = smul.u32 2, %s26
        %s221 = smul.u32 2, %s26
        %v222 = vld [vmem:[%s184] sm:$0xff]
        %v223 = vld [vmem:[%s184 + $0x8] sm:$0xff]
        %v224 = vld [vmem:[%s193] sm:$0xff]
        %v225 = vld [vmem:[%s193 + $0x8] sm:$0xff]
        %vm226 = vcmask 130048
        %v228 = vsel %vm226, %v222, 0
        %v231 = vsel %vm226, %v224, 0
        %233 = vmatprep.subr.mxu0 0.0
        %234 = vmatpush1.xpose.msra.mxu0 %v231
        %235 = vmatprep.subr.mxu0 0.0
        %236 = vmatpush1.xpose.msra.mxu0 0.0
        %237 = vmatprep.subr.mxu0 0.0
        %238 = vmatpush1.xpose.msra.mxu0 0.0
        %239 = vmatprep.subr.mxu0 0.0
        %240 = vmatpush1.xpose.msra.mxu0 0.0
        %241 = vmatprep.subr.mxu0 0.0
        %242 = vmatpush1.xpose.msra.mxu0 0.0
        %243 = vmatprep.subr.mxu0 0.0
        %244 = vmatpush1.xpose.msra.mxu0 0.0
        %245 = vmatprep.subr.mxu0 0.0
        %246 = vmatpush1.xpose.msra.mxu0 0.0
        %247 = vmatprep.subr.mxu0 0.0
        %248 = vmatpush1.xpose.msra.mxu0 0.0
        %249 = vmatprep.subr.mxu0 0.0
        %250 = vmatpush1.xpose.msra.mxu0 0.0
        %251 = vmatprep.subr.mxu0 0.0
        %252 = vmatpush1.xpose.msra.mxu0 0.0
        %253 = vmatprep.subr.mxu0 0.0
        %254 = vmatpush1.xpose.msra.mxu0 0.0
        %255 = vmatprep.subr.mxu0 0.0
        %256 = vmatpush1.xpose.msra.mxu0 0.0
        %257 = vmatprep.subr.mxu0 0.0
        %258 = vmatpush1.xpose.msra.mxu0 0.0
        %259 = vmatprep.subr.mxu0 0.0
        %260 = vmatpush1.xpose.msra.mxu0 0.0
        %261 = vmatprep.subr.mxu0 0.0
        %262 = vmatpush1.xpose.msra.mxu0 0.0
        %263 = vmatprep.subr.mxu0 0.0
        %264 = vmatpush1.xpose.msra.mxu0 0.0
        %265 = vmatprep.subr.mxu0 0.0
        %266 = vmatpush1.xpose.msra.mxu0 0.0
        %267 = vmatprep.subr.mxu0 0.0
        %268 = vmatpush1.xpose.msra.mxu0 0.0
        %269 = vmatprep.subr.mxu0 0.0
        %270 = vmatpush1.xpose.msra.mxu0 0.0
        %271 = vmatprep.subr.mxu0 0.0
        %272 = vmatpush1.xpose.msra.mxu0 0.0
        %273 = vmatprep.subr.mxu0 0.0
        %274 = vmatpush1.xpose.msra.mxu0 0.0
        %275 = vmatprep.subr.mxu0 0.0
        %276 = vmatpush1.xpose.msra.mxu0 0.0
        %277 = vmatprep.subr.mxu0 0.0
        %278 = vmatpush1.xpose.msra.mxu0 0.0
        %279 = vmatprep.subr.mxu0 0.0
        %280 = vmatpush1.xpose.msra.mxu0 0.0
        %281 = vmatprep.subr.mxu0 0.0
        %282 = vmatpush1.xpose.msra.mxu0 0.0
        %283 = vmatprep.subr.mxu0 0.0
        %284 = vmatpush1.xpose.msra.mxu0 0.0
        %285 = vmatprep.subr.mxu0 0.0
        %286 = vmatpush1.xpose.msra.mxu0 0.0
        %287 = vmatprep.subr.mxu0 0.0
        %288 = vmatpush1.xpose.msra.mxu0 0.0
        %289 = vmatprep.subr.mxu0 0.0
        %290 = vmatpush1.xpose.msra.mxu0 0.0
        %291 = vmatprep.subr.mxu0 0.0
        %292 = vmatpush1.xpose.msra.mxu0 0.0
        %293 = vmatprep.subr.mxu0 0.0
        %294 = vmatpush1.xpose.msra.mxu0 0.0
        %295 = vmatprep.subr.mxu0 0.0
        %296 = vmatpush1.xpose.msra.mxu0 0.0
        %297 = vmatprep.mubr.f32.mxu0 0.0
        %298 = vmatmul.mubr.f32.gmra.mrb[0].mxu0 %v228
        %v299 = vpop.f32.mrb[0].mxu0
        %v300 = vadd.f32 0.0, %v299
        %v301 = vpop.f32.mrb[0].mxu0
        %302 = vdwg.mxu0
        %v304 = vsel %vm226, %v223, 0
        %v307 = vsel %vm226, %v225, 0
        %309 = vmatprep.subr.mxu0 0.0
        %310 = vmatpush1.xpose.msra.mxu0 %v307
        %311 = vmatprep.subr.mxu0 0.0
        %312 = vmatpush1.xpose.msra.mxu0 0.0
        %313 = vmatprep.subr.mxu0 0.0
        %314 = vmatpush1.xpose.msra.mxu0 0.0
        %315 = vmatprep.subr.mxu0 0.0
        %316 = vmatpush1.xpose.msra.mxu0 0.0
        %317 = vmatprep.subr.mxu0 0.0
        %318 = vmatpush1.xpose.msra.mxu0 0.0
        %319 = vmatprep.subr.mxu0 0.0
        %320 = vmatpush1.xpose.msra.mxu0 0.0
        %321 = vmatprep.subr.mxu0 0.0
        %322 = vmatpush1.xpose.msra.mxu0 0.0
        %323 = vmatprep.subr.mxu0 0.0
        %324 = vmatpush1.xpose.msra.mxu0 0.0
        %325 = vmatprep.subr.mxu0 0.0
        %326 = vmatpush1.xpose.msra.mxu0 0.0
        %327 = vmatprep.subr.mxu0 0.0
        %328 = vmatpush1.xpose.msra.mxu0 0.0
        %329 = vmatprep.subr.mxu0 0.0
        %330 = vmatpush1.xpose.msra.mxu0 0.0
        %331 = vmatprep.subr.mxu0 0.0
        %332 = vmatpush1.xpose.msra.mxu0 0.0
        %333 = vmatprep.subr.mxu0 0.0
        %334 = vmatpush1.xpose.msra.mxu0 0.0
        %335 = vmatprep.subr.mxu0 0.0
        %336 = vmatpush1.xpose.msra.mxu0 0.0
        %337 = vmatprep.subr.mxu0 0.0
        %338 = vmatpush1.xpose.msra.mxu0 0.0
        %339 = vmatprep.subr.mxu0 0.0
        %340 = vmatpush1.xpose.msra.mxu0 0.0
        %341 = vmatprep.subr.mxu0 0.0
        %342 = vmatpush1.xpose.msra.mxu0 0.0
        %343 = vmatprep.subr.mxu0 0.0
        %344 = vmatpush1.xpose.msra.mxu0 0.0
        %345 = vmatprep.subr.mxu0 0.0
        %346 = vmatpush1.xpose.msra.mxu0 0.0
        %347 = vmatprep.subr.mxu0 0.0
        %348 = vmatpush1.xpose.msra.mxu0 0.0
        %349 = vmatprep.subr.mxu0 0.0
        %350 = vmatpush1.xpose.msra.mxu0 0.0
        %351 = vmatprep.subr.mxu0 0.0
        %352 = vmatpush1.xpose.msra.mxu0 0.0
        %353 = vmatprep.subr.mxu0 0.0
        %354 = vmatpush1.xpose.msra.mxu0 0.0
        %355 = vmatprep.subr.mxu0 0.0
        %356 = vmatpush1.xpose.msra.mxu0 0.0
        %357 = vmatprep.subr.mxu0 0.0
        %358 = vmatpush1.xpose.msra.mxu0 0.0
        %359 = vmatprep.subr.mxu0 0.0
        %360 = vmatpush1.xpose.msra.mxu0 0.0
        %361 = vmatprep.subr.mxu0 0.0
        %362 = vmatpush1.xpose.msra.mxu0 0.0
        %363 = vmatprep.subr.mxu0 0.0
        %364 = vmatpush1.xpose.msra.mxu0 0.0
        %365 = vmatprep.subr.mxu0 0.0
        %366 = vmatpush1.xpose.msra.mxu0 0.0
        %367 = vmatprep.subr.mxu0 0.0
        %368 = vmatpush1.xpose.msra.mxu0 0.0
        %369 = vmatprep.subr.mxu0 0.0
        %370 = vmatpush1.xpose.msra.mxu0 0.0
        %371 = vmatprep.subr.mxu0 0.0
        %372 = vmatpush1.xpose.msra.mxu0 0.0
        %373 = vmatprep.mubr.f32.mxu0 0.0
        %374 = vmatmul.mubr.f32.gmra.mrb[0].mxu0 %v304
        %v375 = vpop.f32.mrb[0].mxu0
        %v376 = vadd.f32 0.0, %v375
        %v377 = vpop.f32.mrb[0].mxu0
        %378 = vdwg.mxu0
        %v379 = vlaneseq
        %v380 = vshrl.u32 %v379, 7
        %s381 = smul.u32 %s27, 8
        %v382 = vstv %s381
        %v383 = vadd.s32 %v380, %v382
        %v384 = vlaneseq
        %v385 = vand.u32 %v384, 127
        %vm386 = vcmp.le.s32.totalorder %v385, %v383
        %v387 = vsel %vm386, 1, 0
        %vm388 = vcmp.eq.s32.totalorder %v387, 1
        %v389 = vsel %vm388, %v300, -1e+30
        %v390 = vsel %vm388, %v376, -1e+30
        %vm391 = vcmask 64512
        %v392 = vsel %vm391, %v389, -inf
        %393 = vmax.xlane.f32.xlu0 %v392
        %v394 = vpop.xlane.xlu0 %393
        %v395 = vsel %vm391, %v390, -inf
        %396 = vmax.xlane.f32.xlu0 %v395
        %v397 = vpop.xlane.xlu0 %396
        %v398 = vsub.f32 %v389, %v394
        %v399 = vsub.f32 %v390, %v397
        %v400 = vmul.f32 %v398, 1.442695
        %v401 = vpow.pop %v400
        %v402 = vmul.f32 %v399, 1.442695
        %v403 = vpow.pop %v402
        %v404 = vsel %vm391, %v401, 0.0
        %405 = vadd.xlane.f32.xlu0 %v404
        %v406 = vpop.xlane.xlu0 %405
        %v407 = vsel %vm391, %v403, 0.0
        %408 = vadd.xlane.f32.xlu0 %v407
        %v409 = vpop.xlane.xlu0 %408
        %v410 = vrcp.pop %v406
        %v411 = vrcp.pop %v409
        %v412 = vmul.f32 %v401, %v410
        %v413 = vmul.f32 %v403, %v411
        %414 = vst.msk [vmem:[%s218] sm:$0xff] %vm391, %v412
        %415 = vst.msk [vmem:[%s218 + $0x8] sm:$0xff] %vm391, %v413
        %s416 = sand.u32 %s98, 1
        %s417 = scalar_lea.sflag [#allocation4], %s416
        %s418 = sand.u32 %s98, 1
        %s419 = smul.addr %s418, 16
        %s420 = scalar_lea.vmem [#allocation7], %s419
        // Predicated region
        $region37: #{tpu_custom_call.1} parent=27 // pred_check
          %p421 = pneg %p108
        $region38: #{tpu_custom_call.1} parent=27 // pred_check_branch
          %423 = sbr.rel (%p421) target = $region40
        $region39: #{tpu_custom_call.1} parent=27 // pred_region
          %s424 = smul.u32 2, %s26
          %s426 = ssub.s32 256, 256
          %427 = vsyncadd %s417, %s426
          %s428 = sadd.s32 %s27, %s424
          %s429 = smul.addr %s428, 128
          %s430 = scalar_lea.hbm %s2, %s429
          %s431 = sshll.u32 %s420, 4
          %s432 = int_to_ptr.vmem [resolvable:$true] %s431
          %437 = dma.vmem_to_hbm [thread:$0]  %s432, 256, %s430, %s417, 128, 128, 8
        $region40: #{tpu_custom_call.1} parent=27 // pred_fallthru
          _
      $region28: #{tpu_custom_call.1} parent=5 // pred_fallthru
        _
      %p438 = scmp.le.s32.totalorder 2, %s17
      // Predicated region
      $region41: #{tpu_custom_call.1} parent=5 // pred_check
        %p439 = pneg %p438
      $region42: #{tpu_custom_call.1} parent=5 // pred_check_branch
        %441 = sbr.rel (%p439) target = $region44
      $region43: #{tpu_custom_call.1} parent=5 // pred_region
        %s442 = ssub.s32 %s17, 2
        // Predicated region
        $region45: #{tpu_custom_call.1} parent=43 // pred_check
          %p443 = pneg %p114
        $region46: #{tpu_custom_call.1} parent=43 // pred_check_branch
          %445 = sbr.rel (%p443) target = $region48
        $region47: #{tpu_custom_call.1} parent=43 // pred_region
          %s446 = sand.u32 %s99, 1
          %s447 = scalar_lea.sflag [#allocation4], %s446
          %s448 = sand.u32 %s99, 1
          %s449 = smul.addr %s448, 16
          %s450 = scalar_lea.vmem [#allocation7], %s449
          %451 = dma.done %s447, 256
        $region48: #{tpu_custom_call.1} parent=43 // pred_fallthru
          _
      $region44: #{tpu_custom_call.1} parent=5 // pred_fallthru
        _
    $region6: #{tpu_custom_call.1} parent=1 // loop_footer
      %s21 = sadd.s32 1, %s17
    $region7: #{tpu_custom_call.1} parent=1 // loop_footer_branch
      %16 = sbr.rel target = $region3
    $region8: #{tpu_custom_call.1} parent=1 // loop_exit
      _
    %452 = vsyncpa [#allocation3], 1
    %s453 = scalar_lea.sflag [#allocation3], 1
    %454 = vsyncpa %s453, 1
    %455 = vsyncpa [#allocation6], 1
    %s456 = scalar_lea.sflag [#allocation6], 1
    %457 = vsyncpa %s456, 1
    %458 = vsyncpa [#allocation4], 1
    %s459 = scalar_lea.sflag [#allocation4], 1
    %460 = vsyncpa %s459, 1

</llo_original>
